<compile_context>
chip_gen: v5e
topology: v5e:2x2
jax: 0.10.0
libtpu: 0.0.40
codegen_flags: <defaults>
</compile_context>

<pallas_src>
import jax
import jax.numpy as jnp
from jax.experimental import pallas as pl
from jax.experimental.pallas import tpu as pltpu


LATENT_DIM = 512
MXU_MIN_C = 128   # below this a (C,C)x(C,T) dot is mostly MXU padding; use VPU FMAs


# ---------------- fused kernel: normalize + style affine + modulated 1x1 conv ----
def fused_generator_kernel(dlat_ref, wsty_ref, bsty_ref, wconv_ref,
                           img_ref, o_ref, wmod_ref):
    # dlat_ref : (1, 1, 512)   wsty_ref : (C, 512)   bsty_ref : (C, 1)
    # wconv_ref: (C, C)        img_ref/o_ref: (1, C, T_HW)
    # wmod_ref : (C, C) VMEM scratch, persistent across the spatial (t) axis.

    @pl.when(pl.program_id(1) == 0)            # once per batch (t axis is inner)
    def _():
        x = dlat_ref[0]                                            # (1, 512)
        # L2 normalize (rsqrt -> EUP slot). eps only guards an all-zero row.
        inv = jax.lax.rsqrt(jnp.sum(x * x, axis=1, keepdims=True) + 1e-12)
        xn = x * inv                                               # (1, 512)
        # Style affine, lane-dense: (C,512)*(1,512) mul + lane reduction -> (C,1).
        style = jnp.sum(wsty_ref[...] * xn, axis=1, keepdims=True)  # (C, 1)
        mod = 1.0 + style + bsty_ref[...]                          # (C, 1)
        # Fold modulation into the conv weights (row scale) once per batch.
        wmod_ref[...] = mod * wconv_ref[...]                       # (C, C)

    img = img_ref[0]                                               # (C, T_HW)
    wm = wmod_ref[...]                                             # (C, C)
    C = wm.shape[0]
    if C >= MXU_MIN_C:
        # Realistic-size path: bf16 MXU operands, f32 accumulation.
        y = jnp.dot(wm.astype(jnp.bfloat16), img.astype(jnp.bfloat16),
                    preferred_element_type=jnp.float32)
    else:
        # Tiny-C path: C broadcast-multiply-adds on the VPU, MXU stays idle.
        y = wm[:, 0:1] * img[0:1, :]
        for k in range(1, C):
            y = y + wm[:, k:k + 1] * img[k:k + 1, :]
    o_ref[0] = y.astype(o_ref.dtype)


# ------------------------------- tiling helpers ---------------------------------
def _pick_hw_tile(hw, c, b, dtype_bytes=4, budget_bytes=8 * 1024 * 1024):
    """Largest lane-aligned HW tile (multiple of 128, divides HW) whose
    double-buffered img + out tiles fit a cross-generation VMEM budget."""
    if hw % 128 != 0:
        return hw                               # full-extent block is always legal

    def fits(t):
        return 2 * 2 * c * t * dtype_bytes <= budget_bytes   # 2 bufs x (img + out)

    best = 128
    for t in range(hw, 127, -128):
        if hw % t == 0 and fits(t):
            best = t
            break
    # v7x has 2 TensorCores: if the batch axis can't feed both, split HW once.
    if b < 2 and best == hw:
        for t in range(hw // 2, 127, -128):
            if hw % t == 0 and fits(t):
                return t
    return best


def _vmem_limit_bytes(c, t, d_style=LATENT_DIM, dtype_bytes=4):
    tiles = 2 * 2 * c * t * dtype_bytes                         # img + out, 2-deep
    consts = 2 * (c * d_style + c + c * c + d_style) * dtype_bytes
    scratch = c * c * dtype_bytes
    need = tiles + consts + scratch
    # Explicit scoped-VMEM budget: >= v5e's 16 MiB default, well under v7x's
    # 64 MiB physical ceiling.
    return int(min(max(4 * need, 16 * 1024 * 1024), 48 * 1024 * 1024))


# ------------------------------- synthetic netG ----------------------------------
def synthetic_netg(img_nchw, dlatents, params):
    # TODO(synk): netG is an external, unspecified generator in the original
    #             code; this is a deterministic synthetic stand-in with the same
    #             dataflow (style affine -> style-modulated 1x1 conv).
    B, C, H, W = img_nchw.shape
    HW = H * W
    img_flat = img_nchw.reshape(B, C, HW)             # pure reshape, no transpose
    dlat3d = dlatents.reshape(B, 1, LATENT_DIM)
    w_style = params["w_style"]                       # lane-dense (C, 512)
    b_style = params["b_style"].reshape(C, 1)
    w_conv = params["w_conv"]                         # (C, C)

    T = _pick_hw_tile(HW, C, B)
    grid = (B, HW // T)

    out_flat = pl.pallas_call(
        fused_generator_kernel,
        out_shape=jax.ShapeDtypeStruct((B, C, HW), jnp.float32),
        grid_spec=pltpu.PrefetchScalarGridSpec(
            num_scalar_prefetch=0,
            grid=grid,
            in_specs=[
                pl.BlockSpec((1, 1, LATENT_DIM), lambda b, t: (b, 0, 0)),  # latent
                pl.BlockSpec((C, LATENT_DIM),    lambda b, t: (0, 0)),     # w_style
                pl.BlockSpec((C, 1),             lambda b, t: (0, 0)),     # b_style
                pl.BlockSpec((C, C),             lambda b, t: (0, 0)),     # w_conv
                pl.BlockSpec((1, C, T),          lambda b, t: (b, 0, t)),  # img tile
            ],
            out_specs=pl.BlockSpec((1, C, T), lambda b, t: (b, 0, t)),
            scratch_shapes=[pltpu.VMEM((C, C), jnp.float32)],              # w_mod
        ),
        compiler_params=pltpu.CompilerParams(
            dimension_semantics=("parallel", "arbitrary"),   # t inner, init at t==0
            vmem_limit_bytes=_vmem_limit_bytes(C, T)),
    )(dlat3d, w_style, b_style, w_conv, img_flat)

    return out_flat.reshape(B, C, H, W)


# ------------------------------- GeneratorWrapper --------------------------------
def generator_wrapper_forward(img, params, latent_key):
    B = img.shape[0]
    # torch.randn(img.size(0), 512); the L2 normalization itself is fused into
    # the Pallas kernel prologue.
    dlatents = jax.random.normal(latent_key, (B, LATENT_DIM), dtype=jnp.float32)
    # netG(img, dlatents=dlatents)
    return synthetic_netg(img, dlatents, params)


if __name__ == "__main__":
    key = jax.random.PRNGKey(0)
    k_img, k_lat, k_ws, k_bs, k_wc = jax.random.split(key, 5)

    B, C, H, W = 2, 4, 16, 16
    img = jax.random.normal(k_img, (B, C, H, W), dtype=jnp.float32)

    # deterministic synthetic netG parameters (w_style stored lane-dense (C, 512))
    params = {
        "w_style": 0.02 * jax.random.normal(k_ws, (C, LATENT_DIM), dtype=jnp.float32),
        "b_style": 0.01 * jax.random.normal(k_bs, (C,), dtype=jnp.float32),
        "w_conv":  0.1 * jax.random.normal(k_wc, (C, C), dtype=jnp.float32),
    }

    out = generator_wrapper_forward(img, params, k_lat)
    jax.block_until_ready(out)
    assert out.shape == (B, C, H, W)

    # pure-JAX reference (same synthetic netG) for a tolerance check
    dl = jax.random.normal(k_lat, (B, LATENT_DIM), dtype=jnp.float32)
    dln = dl / jnp.linalg.norm(dl, axis=1, keepdims=True)
    style = dln @ params["w_style"].T + params["b_style"]          # (B, C)
    mod = 1.0 + style                                              # (B, C)
    ref = mod[:, :, None, None] * jnp.einsum("oi,bihw->bohw", params["w_conv"], img)
    assert bool(jnp.all(jnp.isfinite(out)))
    assert jnp.allclose(out, ref, atol=1e-5, rtol=1e-5)

    print("KERNEL_OK")
</pallas_src>

<mosaic_0001>
module attributes {stable_mosaic.version = 11 : i64} {
  func.func @fused_generator_kernel(%arg0: i32, %arg1: i32, %arg2: memref<1x1x512xf32, #tpu.memory_space<vmem>>, %arg3: memref<4x512xf32, #tpu.memory_space<vmem>>, %arg4: memref<4x1xf32, #tpu.memory_space<vmem>>, %arg5: memref<4x4xf32, #tpu.memory_space<vmem>>, %arg6: memref<1x4x256xf32, #tpu.memory_space<vmem>>, %arg7: memref<1x4x256xf32, #tpu.memory_space<vmem>>, %arg8: memref<4x4xf32, #tpu.memory_space<vmem>>) attributes {dimension_semantics = [#tpu.dimension_semantics<parallel>, #tpu.dimension_semantics<arbitrary>], iteration_bounds = array<i64: 2, 1>, scalar_prefetch = 0 : i64, scratch_operands = 1 : i64, tpu.core_type = #tpu.core_type<tc>, window_params = [{transform_indices = @transform_0, window_bounds = array<i64: 1, 1, 512>}, {pipeline_mode = #tpu.pipeline_mode<synchronous>, transform_indices = @transform_1, window_bounds = array<i64: 4, 512>}, {pipeline_mode = #tpu.pipeline_mode<synchronous>, transform_indices = @transform_2, window_bounds = array<i64: 4, 1>}, {pipeline_mode = #tpu.pipeline_mode<synchronous>, transform_indices = @transform_3, window_bounds = array<i64: 4, 4>}, {transform_indices = @transform_4, window_bounds = array<i64: 1, 4, 256>}, {transform_indices = @transform_5, window_bounds = array<i64: 1, 4, 256>}]} {
    %c0_i32 = arith.constant 0 : i32
    %0 = arith.cmpi eq, %arg1, %c0_i32 : i32
    %1 = arith.extui %0 : i1 to i32
    %c0_i32_0 = arith.constant 0 : i32
    %2 = arith.cmpi ne, %1, %c0_i32_0 : i32
    scf.if %2 {
      %c0_8 = arith.constant 0 : index
      %c0_9 = arith.constant 0 : index
      %c0_10 = arith.constant 0 : index
      %32 = vector.load %arg2[%c0_8, %c0_9, %c0_10] : memref<1x1x512xf32, #tpu.memory_space<vmem>>, vector<1x1x512xf32>
      %33 = vector.shape_cast %32 : vector<1x1x512xf32> to vector<1x512xf32>
      %34 = arith.mulf %33, %33 : vector<1x512xf32>
      %cst = arith.constant dense<0.000000e+00> : vector<1xf32>
      %35 = vector.multi_reduction <add>, %34, %cst [1] : vector<1x512xf32> to vector<1xf32>
      %36 = vector.shape_cast %35 : vector<1xf32> to vector<1x1xf32>
      %cst_11 = arith.constant 9.99999996E-13 : f32
      %37 = vector.broadcast %cst_11 : f32 to vector<1x1xf32>
      %38 = arith.addf %36, %37 : vector<1x1xf32>
      %39 = math.rsqrt %38 : vector<1x1xf32>
      %40 = vector.broadcast %39 : vector<1x1xf32> to vector<1x512xf32>
      %41 = arith.mulf %33, %40 : vector<1x512xf32>
      %c0_12 = arith.constant 0 : index
      %c0_13 = arith.constant 0 : index
      %42 = vector.load %arg3[%c0_12, %c0_13] : memref<4x512xf32, #tpu.memory_space<vmem>>, vector<4x512xf32>
      %43 = vector.broadcast %41 : vector<1x512xf32> to vector<4x512xf32>
      %44 = arith.mulf %42, %43 : vector<4x512xf32>
      %cst_14 = arith.constant dense<0.000000e+00> : vector<4xf32>
      %45 = vector.multi_reduction <add>, %44, %cst_14 [1] : vector<4x512xf32> to vector<4xf32>
      %46 = vector.shape_cast %45 : vector<4xf32> to vector<4x1xf32>
      %cst_15 = arith.constant 1.000000e+00 : f32
      %47 = vector.broadcast %cst_15 : f32 to vector<4x1xf32>
      %48 = arith.addf %47, %46 : vector<4x1xf32>
      %c0_16 = arith.constant 0 : index
      %c0_17 = arith.constant 0 : index
      %49 = vector.load %arg4[%c0_16, %c0_17] : memref<4x1xf32, #tpu.memory_space<vmem>>, vector<4x1xf32>
      %50 = arith.addf %48, %49 : vector<4x1xf32>
      %c0_18 = arith.constant 0 : index
      %c0_19 = arith.constant 0 : index
      %51 = vector.load %arg5[%c0_18, %c0_19] : memref<4x4xf32, #tpu.memory_space<vmem>>, vector<4x4xf32>
      %52 = vector.broadcast %50 : vector<4x1xf32> to vector<4x4xf32>
      %53 = arith.mulf %52, %51 : vector<4x4xf32>
      %c0_20 = arith.constant 0 : index
      %c0_21 = arith.constant 0 : index
      %54 = vector.load %arg8[%c0_20, %c0_21] : memref<4x4xf32, #tpu.memory_space<vmem>>, vector<4x4xf32>
      tpu.vector_store %arg8[%c0_20, %c0_21], %53 {strides = array<i32>} : memref<4x4xf32, #tpu.memory_space<vmem>>, vector<4x4xf32>,
    } else {
    }
    %c0 = arith.constant 0 : index
    %c0_1 = arith.constant 0 : index
    %c0_2 = arith.constant 0 : index
    %3 = vector.load %arg6[%c0, %c0_1, %c0_2] : memref<1x4x256xf32, #tpu.memory_space<vmem>>, vector<1x4x256xf32>
    %4 = vector.shape_cast %3 : vector<1x4x256xf32> to vector<4x256xf32>
    %c0_3 = arith.constant 0 : index
    %c0_4 = arith.constant 0 : index
    %5 = vector.load %arg8[%c0_3, %c0_4] : memref<4x4xf32, #tpu.memory_space<vmem>>, vector<4x4xf32>
    %6 = vector.extract_strided_slice %5 {offsets = [0, 0], sizes = [4, 1], strides = [1, 1]} : vector<4x4xf32> to vector<4x1xf32>
    %7 = vector.extract_strided_slice %4 {offsets = [0, 0], sizes = [1, 256], strides = [1, 1]} : vector<4x256xf32> to vector<1x256xf32>
    %8 = vector.broadcast %6 : vector<4x1xf32> to vector<4x256xf32>
    %9 = vector.broadcast %7 : vector<1x256xf32> to vector<4x256xf32>
    %10 = arith.mulf %8, %9 : vector<4x256xf32>
    %11 = vector.extract_strided_slice %5 {offsets = [0, 1], sizes = [4, 1], strides = [1, 1]} : vector<4x4xf32> to vector<4x1xf32>
    %12 = vector.extract_strided_slice %4 {offsets = [1, 0], sizes = [1, 256], strides = [1, 1]} : vector<4x256xf32> to vector<1x256xf32>
    %13 = vector.broadcast %11 : vector<4x1xf32> to vector<4x256xf32>
    %14 = vector.broadcast %12 : vector<1x256xf32> to vector<4x256xf32>
    %15 = arith.mulf %13, %14 : vector<4x256xf32>
    %16 = arith.addf %10, %15 : vector<4x256xf32>
    %17 = vector.extract_strided_slice %5 {offsets = [0, 2], sizes = [4, 1], strides = [1, 1]} : vector<4x4xf32> to vector<4x1xf32>
    %18 = vector.extract_strided_slice %4 {offsets = [2, 0], sizes = [1, 256], strides = [1, 1]} : vector<4x256xf32> to vector<1x256xf32>
    %19 = vector.broadcast %17 : vector<4x1xf32> to vector<4x256xf32>
    %20 = vector.broadcast %18 : vector<1x256xf32> to vector<4x256xf32>
    %21 = arith.mulf %19, %20 : vector<4x256xf32>
    %22 = arith.addf %16, %21 : vector<4x256xf32>
    %23 = vector.extract_strided_slice %5 {offsets = [0, 3], sizes = [4, 1], strides = [1, 1]} : vector<4x4xf32> to vector<4x1xf32>
    %24 = vector.extract_strided_slice %4 {offsets = [3, 0], sizes = [1, 256], strides = [1, 1]} : vector<4x256xf32> to vector<1x256xf32>
    %25 = vector.broadcast %23 : vector<4x1xf32> to vector<4x256xf32>
    %26 = vector.broadcast %24 : vector<1x256xf32> to vector<4x256xf32>
    %27 = arith.mulf %25, %26 : vector<4x256xf32>
    %28 = arith.addf %22, %27 : vector<4x256xf32>
    %c0_5 = arith.constant 0 : index
    %c0_6 = arith.constant 0 : index
    %c0_7 = arith.constant 0 : index
    %29 = vector.load %arg7[%c0_5, %c0_6, %c0_7] : memref<1x4x256xf32, #tpu.memory_space<vmem>>, vector<1x4x256xf32>
    %30 = vector.shape_cast %29 : vector<1x4x256xf32> to vector<4x256xf32>
    %31 = vector.shape_cast %28 : vector<4x256xf32> to vector<1x4x256xf32>
    tpu.vector_store %arg7[%c0_5, %c0_6, %c0_7], %31 {strides = array<i32>} : memref<1x4x256xf32, #tpu.memory_space<vmem>>, vector<1x4x256xf32>,
    return
  }
  func.func @transform_0(%arg0: i32, %arg1: i32) -> (i32, i32, i32) {
    %c0_i32 = arith.constant 0 : i32
    %c0_i32_0 = arith.constant 0 : i32
    %c0_i32_1 = arith.constant 0 : i32
    return %arg0, %c0_i32, %c0_i32_0 : i32, i32, i32
  }
  func.func @transform_1(%arg0: i32, %arg1: i32) -> (i32, i32) {
    %c0_i32 = arith.constant 0 : i32
    %c0_i32_0 = arith.constant 0 : i32
    %c0_i32_1 = arith.constant 0 : i32
    return %c0_i32, %c0_i32_0 : i32, i32
  }
  func.func @transform_2(%arg0: i32, %arg1: i32) -> (i32, i32) {
    %c0_i32 = arith.constant 0 : i32
    %c0_i32_0 = arith.constant 0 : i32
    %c0_i32_1 = arith.constant 0 : i32
    return %c0_i32, %c0_i32_0 : i32, i32
  }
  func.func @transform_3(%arg0: i32, %arg1: i32) -> (i32, i32) {
    %c0_i32 = arith.constant 0 : i32
    %c0_i32_0 = arith.constant 0 : i32
    %c0_i32_1 = arith.constant 0 : i32
    return %c0_i32, %c0_i32_0 : i32, i32
  }
  func.func @transform_4(%arg0: i32, %arg1: i32) -> (i32, i32, i32) {
    %c0_i32 = arith.constant 0 : i32
    %c0_i32_0 = arith.constant 0 : i32
    return %arg0, %c0_i32, %arg1 : i32, i32, i32
  }
  func.func @transform_5(%arg0: i32, %arg1: i32) -> (i32, i32, i32) {
    %c0_i32 = arith.constant 0 : i32
    %c0_i32_0 = arith.constant 0 : i32
    return %arg0, %c0_i32, %arg1 : i32, i32, i32
  }
}

</mosaic_0001>

<llo_original>
// kernel: tpu_custom_call.1
$region0: #{tpu_custom_call.1}
  #allocation0 [shape = 'u32[]', space=smem, size = 0x4, offset = 0x4, fixed_abs, tag = 'smem constant byte address 0x4 - core index']
  #allocation1 [shape = 'u32[72,128]{1,0:T(1,128)}', space=vmem, size = 0x9000, scoped, tag = 'internal scratch']
  #allocation2 [shape = 'f32[4,4]{1,0:T(4,128)}', space=vmem, size = 0x800, scoped, tag = 'scratch operand']
  %s0 = inlined_call_operand.hbm [shape: f32[2,1,512], index: 0, kind: input, shape index: {}]
  %s1 = inlined_call_operand.hbm [shape: f32[4,512], index: 1, kind: input, shape index: {}]
  %s2 = inlined_call_operand.vmem [shape: f32[4,1], index: 2, kind: input, shape index: {}]
  %s3 = inlined_call_operand.vmem [shape: f32[4,4], index: 3, kind: input, shape index: {}]
  %s4 = inlined_call_operand.hbm [shape: f32[2,4,256], index: 4, kind: input, shape index: {}]
  %s5 = inlined_call_operand.hbm [shape: f32[2,4,256], index: 5, kind: output, shape index: {}]
  %s6 = sld [smem:[#allocation0]]
  $region69: #{tpu_custom_call.1} parent=0
    _
  %s8 = ssub.s32 1, %s6
  %s9 = scalar_select 0, %s8, %s6
  $region1: #{tpu_custom_call.1} parent=0
    #allocation3 [shape = 'u8[4096]{0}', space=vmem, size = 0x1000, scoped, tag = 'input window, operand 0']
    #allocation4 [shape = 's32[2]{0}', space=sflag, size = 0x8, scoped, tag = 'scoped memory for tpu_custom_call.1']
    #allocation5 [shape = 's32[2]{0}', space=sflag, size = 0x8, scoped, tag = 'scoped memory for tpu_custom_call.1']
    #allocation6 [shape = 'u8[8192]{0}', space=vmem, size = 0x2000, scoped, tag = 'input window, operand 1, single buffered']
    #allocation7 [shape = 's32[1]{0}', space=sflag, size = 0x4, scoped, tag = 'scoped memory for tpu_custom_call.1']
    #allocation8 [shape = 'u8[8192]{0}', space=vmem, size = 0x2000, scoped, tag = 'input window, operand 4']
    #allocation9 [shape = 'u8[8192]{0}', space=vmem, size = 0x2000, scoped, tag = 'output window, operand 0']
    %10 = vsyncpa [#allocation4], 0
    %s11 = scalar_lea.sflag [#allocation4], 1
    %12 = vsyncpa %s11, 0
    %13 = vsyncpa [#allocation7], 0
    %14 = vsyncpa [#allocation5], 0
    %s15 = scalar_lea.sflag [#allocation5], 1
    %16 = vsyncpa %s15, 0
    loop: start=0, step=1, limit=4
    $region2: #{tpu_custom_call.1} parent=1 // loop_pre_header
      _
    $region3: #{tpu_custom_call.1} parent=1 // loop_header
      %s18 = sphi 0, %s22
      %p19 = scmp.ge.s32.totalorder %s18, 4
      %s25 = sphi 0, %s37
      %s26 = sphi 0, %s33
      %s27 = sphi 0, %s25
      %s28 = sphi 0, %s26
      %s29 = sphi 0, %s27
      %s30 = sphi 0, %s28
      %s40 = sphi 0, %s42
      %s43 = sphi 0, %s40
      %s44 = sphi 0, %s43
      %s60 = sphi 0, %s44
      %s64 = sphi 0, %s64
      %s66 = sphi 0, %s64
      %s67 = sphi 0, %s66
      %s81 = sphi 0, %s67
      %s85 = sphi 0, %s85
      %s87 = sphi 0, %s85
      %s88 = sphi 0, %s87
      %s102 = sphi 0, %s88
      %s106 = sphi 0, %s106
      %s108 = sphi 0, %s106
      %s109 = sphi 0, %s108
      %s123 = sphi 0, %s109
      %s131 = sphi 0, %s133
      %s134 = sphi 0, %s131
      %s135 = sphi 0, %s134
      %s151 = sphi 0, %s135
      %s159 = sphi 0, %s161
      %s162 = sphi 0, %s159
      %s163 = sphi 0, %s162
      %s179 = sphi 0, %s163
    $region4: #{tpu_custom_call.1} parent=1 // loop_header_branch
      %21 = sbr.rel (%p19) target = $region8
    $region5: #{tpu_custom_call.1} parent=1 // loop_body
      %s23 = ssub.s32 %s18, 1
      %s24 = ssub.s32 %s18, 2
      %s31 = sadd.s32 1, %s26
      %p32 = scmp.ge.s32.totalorder %s31, 1
      %s33 = scalar_select %p32, 0, %s31
      %s34 = sadd.s32 1, %s25
      %s35 = scalar_select %p32, %s34, %s25
      %p36 = scmp.ge.s32.totalorder %s35, 2
      %s37 = scalar_select %p36, 0, %s35
      %s38 = ssub.s32 %s25, %s37
      %p39 = scmp.eq.s32.totalorder %s38, 0
      %s41 = sadd.s32 %s40, 1
      %s42 = scalar_select %p39, %s40, %s41
      %p45 = pneg %p39
      %p46 = scmp.eq.s32.totalorder %s18, 1
      %p47 = por %p45, %p46
      %p48 = scmp.ne.s32.totalorder %s40, %s43
      %p49 = scmp.eq.s32.totalorder %s18, 0
      %p50 = por %p48, %p49
      %p51 = scmp.ne.s32.totalorder %s40, %s43
      %p52 = scmp.eq.s32.totalorder %s23, 1
      %p53 = por %p51, %p52
      %p54 = scmp.ne.s32.totalorder %s43, %s44
      %p55 = scmp.eq.s32.totalorder %s23, 0
      %p56 = por %p54, %p55
      %p57 = scmp.ne.s32.totalorder %s43, %s44
      %p58 = scmp.eq.s32.totalorder %s24, 1
      %p59 = por %p57, %p58
      %p61 = scmp.ne.s32.totalorder %s44, %s60
      %p62 = scmp.eq.s32.totalorder %s24, 0
      %p63 = por %p61, %p62
      %s65 = sadd.s32 %s64, 1
      %p68 = scmp.eq.s32.totalorder %s18, 1
      %p69 = scmp.ne.s32.totalorder %s64, %s66
      %p70 = scmp.eq.s32.totalorder %s18, 0
      %p71 = por %p69, %p70
      %p72 = scmp.ne.s32.totalorder %s64, %s66
      %p73 = scmp.eq.s32.totalorder %s23, 1
      %p74 = por %p72, %p73
      %p75 = scmp.ne.s32.totalorder %s66, %s67
      %p76 = scmp.eq.s32.totalorder %s23, 0
      %p77 = por %p75, %p76
      %p78 = scmp.ne.s32.totalorder %s66, %s67
      %p79 = scmp.eq.s32.totalorder %s24, 1
      %p80 = por %p78, %p79
      %p82 = scmp.ne.s32.totalorder %s67, %s81
      %p83 = scmp.eq.s32.totalorder %s24, 0
      %p84 = por %p82, %p83
      %s86 = sadd.s32 %s85, 1
      %p89 = scmp.eq.s32.totalorder %s18, 1
      %p90 = scmp.ne.s32.totalorder %s85, %s87
      %p91 = scmp.eq.s32.totalorder %s18, 0
      %p92 = por %p90, %p91
      %p93 = scmp.ne.s32.totalorder %s85, %s87
      %p94 = scmp.eq.s32.totalorder %s23, 1
      %p95 = por %p93, %p94
      %p96 = scmp.ne.s32.totalorder %s87, %s88
      %p97 = scmp.eq.s32.totalorder %s23, 0
      %p98 = por %p96, %p97
      %p99 = scmp.ne.s32.totalorder %s87, %s88
      %p100 = scmp.eq.s32.totalorder %s24, 1
      %p101 = por %p99, %p100
      %p103 = scmp.ne.s32.totalorder %s88, %s102
      %p104 = scmp.eq.s32.totalorder %s24, 0
      %p105 = por %p103, %p104
      %s107 = sadd.s32 %s106, 1
      %p110 = scmp.eq.s32.totalorder %s18, 1
      %p111 = scmp.ne.s32.totalorder %s106, %s108
      %p112 = scmp.eq.s32.totalorder %s18, 0
      %p113 = por %p111, %p112
      %p114 = scmp.ne.s32.totalorder %s106, %s108
      %p115 = scmp.eq.s32.totalorder %s23, 1
      %p116 = por %p114, %p115
      %p117 = scmp.ne.s32.totalorder %s108, %s109
      %p118 = scmp.eq.s32.totalorder %s23, 0
      %p119 = por %p117, %p118
      %p120 = scmp.ne.s32.totalorder %s108, %s109
      %p121 = scmp.eq.s32.totalorder %s24, 1
      %p122 = por %p120, %p121
      %p124 = scmp.ne.s32.totalorder %s109, %s123
      %p125 = scmp.eq.s32.totalorder %s24, 0
      %p126 = por %p124, %p125
      %s127 = ssub.s32 %s25, %s37
      %s128 = ssub.s32 %s26, %s33
      %s129 = sor.u32 %s127, %s128
      %p130 = scmp.eq.s32.totalorder %s129, 0
      %s132 = sadd.s32 %s131, 1
      %s133 = scalar_select %p130, %s131, %s132
      %p136 = pneg %p130
      %p137 = scmp.eq.s32.totalorder %s18, 1
      %p138 = por %p136, %p137
      %p139 = scmp.ne.s32.totalorder %s131, %s134
      %p140 = scmp.eq.s32.totalorder %s18, 0
      %p141 = por %p139, %p140
      %p142 = scmp.ne.s32.totalorder %s131, %s134
      %p143 = scmp.eq.s32.totalorder %s23, 1
      %p144 = por %p142, %p143
      %p145 = scmp.ne.s32.totalorder %s134, %s135
      %p146 = scmp.eq.s32.totalorder %s23, 0
      %p147 = por %p145, %p146
      %p148 = scmp.ne.s32.totalorder %s134, %s135
      %p149 = scmp.eq.s32.totalorder %s24, 1
      %p150 = por %p148, %p149
      %p152 = scmp.ne.s32.totalorder %s135, %s151
      %p153 = scmp.eq.s32.totalorder %s24, 0
      %p154 = por %p152, %p153
      %s155 = ssub.s32 %s25, %s37
      %s156 = ssub.s32 %s26, %s33
      %s157 = sor.u32 %s155, %s156
      %p158 = scmp.eq.s32.totalorder %s157, 0
      %s160 = sadd.s32 %s159, 1
      %s161 = scalar_select %p158, %s159, %s160
      %p164 = pneg %p158
      %p165 = scmp.eq.s32.totalorder %s18, 1
      %p166 = por %p164, %p165
      %p167 = scmp.ne.s32.totalorder %s159, %s162
      %p168 = scmp.eq.s32.totalorder %s18, 0
      %p169 = por %p167, %p168
      %p170 = scmp.ne.s32.totalorder %s159, %s162
      %p171 = scmp.eq.s32.totalorder %s23, 1
      %p172 = por %p170, %p171
      %p173 = scmp.ne.s32.totalorder %s162, %s163
      %p174 = scmp.eq.s32.totalorder %s23, 0
      %p175 = por %p173, %p174
      %p176 = scmp.ne.s32.totalorder %s162, %s163
      %p177 = scmp.eq.s32.totalorder %s24, 1
      %p178 = por %p176, %p177
      %p180 = scmp.ne.s32.totalorder %s163, %s179
      %p181 = scmp.eq.s32.totalorder %s24, 0
      %p182 = por %p180, %p181
      %p183 = scmp.le.s32.totalorder 1, %s18
      %p184 = scmp.lt.s32.totalorder %s18, 3
      %p185 = pnand %p183, %p184
      %p186 = pneg %p185
      // Predicated region
      $region9: #{tpu_custom_call.1} parent=5 // pred_check
        _
      $region10: #{tpu_custom_call.1} parent=5 // pred_check_branch
        %188 = sbr.rel (%p185) target = $region12
      $region11: #{tpu_custom_call.1} parent=5 // pred_region
        %s189 = ssub.s32 %s18, 1
        // Predicated region
        $region13: #{tpu_custom_call.1} parent=11 // pred_check
          %p190 = pneg %p77
        $region14: #{tpu_custom_call.1} parent=11 // pred_check_branch
          %192 = sbr.rel (%p190) target = $region16
        $region15: #{tpu_custom_call.1} parent=11 // pred_region
          %194 = vsyncadd [#allocation7], 0
          %s196 = sshll.u32 %s1, 4
          %s197 = int_to_ptr.hbm [resolvable:$true] %s196
          %s198 = sshll.u32 [#allocation6], 4
          %s199 = int_to_ptr.vmem [resolvable:$true] %s198
          %201 = dma.hbm_to_vmem [thread:$0]  %s197, 256, %s199, [#allocation7]
        $region16: #{tpu_custom_call.1} parent=11 // pred_fallthru
          _
        // Predicated region
        $region17: #{tpu_custom_call.1} parent=11 // pred_check
          %p202 = pneg %p98
        $region18: #{tpu_custom_call.1} parent=11 // pred_check_branch
          %204 = sbr.rel (%p202) target = $region20
        $region19: #{tpu_custom_call.1} parent=11 // pred_region
          _
        $region20: #{tpu_custom_call.1} parent=11 // pred_fallthru
          _
        // Predicated region
        $region21: #{tpu_custom_call.1} parent=11 // pred_check
          %p205 = pneg %p119
        $region22: #{tpu_custom_call.1} parent=11 // pred_check_branch
          %207 = sbr.rel (%p205) target = $region24
        $region23: #{tpu_custom_call.1} parent=11 // pred_region
          _
        $region24: #{tpu_custom_call.1} parent=11 // pred_fallthru
          _
      $region12: #{tpu_custom_call.1} parent=5 // pred_fallthru
        _
      %p208 = scmp.lt.s32.totalorder %s18, 2
      // Predicated region
      $region25: #{tpu_custom_call.1} parent=5 // pred_check
        %p209 = pneg %p208
      $region26: #{tpu_custom_call.1} parent=5 // pred_check_branch
        %211 = sbr.rel (%p209) target = $region28
      $region27: #{tpu_custom_call.1} parent=5 // pred_region
        // Predicated region
        $region29: #{tpu_custom_call.1} parent=27 // pred_check
          %p212 = pneg %p50
        $region30: #{tpu_custom_call.1} parent=27 // pred_check_branch
          %214 = sbr.rel (%p212) target = $region32
        $region31: #{tpu_custom_call.1} parent=27 // pred_region
          %s215 = sand.u32 %s18, 1
          %s216 = scalar_lea.sflag [#allocation4], %s215
          %s217 = sand.u32 %s40, 1
          %s218 = smul.addr %s217, 4
          %s219 = scalar_lea.vmem [#allocation3], %s218
          %221 = vsyncadd %s216, 0
          %s222 = smul.addr %s25, 4
          %s223 = scalar_lea.hbm %s0, %s222
          %s225 = sshll.u32 %s223, 4
          %s226 = int_to_ptr.hbm [resolvable:$true] %s225
          %s227 = sshll.u32 %s219, 4
          %s228 = int_to_ptr.vmem [resolvable:$true] %s227
          %230 = dma.hbm_to_vmem [thread:$0]  %s226, 64, %s228, %s216
        $region32: #{tpu_custom_call.1} parent=27 // pred_fallthru
          _
        // Predicated region
        $region33: #{tpu_custom_call.1} parent=27 // pred_check
          %p231 = pneg %p141
        $region34: #{tpu_custom_call.1} parent=27 // pred_check_branch
          %233 = sbr.rel (%p231) target = $region36
        $region35: #{tpu_custom_call.1} parent=27 // pred_region
          %s234 = sand.u32 %s18, 1
          %s235 = scalar_lea.sflag [#allocation4], %s234
          %s236 = sand.u32 %s131, 1
          %s237 = smul.addr %s236, 8
          %s238 = scalar_lea.vmem [#allocation8], %s237
          %s239 = smul.u32 2, %s26
          %241 = vsyncadd %s235, 0
          %s242 = smul.addr %s25, 2
          %s243 = sadd.s32 %s239, %s242
          %s244 = smul.addr %s243, 4
          %s245 = scalar_lea.hbm %s4, %s244
          %s247 = sshll.u32 %s245, 4
          %s248 = int_to_ptr.hbm [resolvable:$true] %s247
          %s249 = sshll.u32 %s238, 4
          %s250 = int_to_ptr.vmem [resolvable:$true] %s249
          %252 = dma.hbm_to_vmem [thread:$0]  %s248, 128, %s250, %s235
        $region36: #{tpu_custom_call.1} parent=27 // pred_fallthru
          _
      $region28: #{tpu_custom_call.1} parent=5 // pred_fallthru
        _
      %p253 = scmp.le.s32.totalorder 1, %s18
      %p254 = scmp.lt.s32.totalorder %s18, 3
      %p255 = pnand %p253, %p254
      %p256 = pneg %p255
      // Predicated region
      $region37: #{tpu_custom_call.1} parent=5 // pred_check
        _
      $region38: #{tpu_custom_call.1} parent=5 // pred_check_branch
        %258 = sbr.rel (%p255) target = $region40
      $region39: #{tpu_custom_call.1} parent=5 // pred_region
        %s259 = ssub.s32 %s18, 1
        %s260 = sand.u32 %s23, 1
        %s261 = scalar_lea.sflag [#allocation4], %s260
        %s262 = sand.u32 %s43, 1
        %s263 = smul.addr %s262, 4
        %s264 = scalar_lea.vmem [#allocation3], %s263
        // Predicated region
        $region41: #{tpu_custom_call.1} parent=39 // pred_check
          %p265 = pneg %p56
        $region42: #{tpu_custom_call.1} parent=39 // pred_check_branch
          %267 = sbr.rel (%p265) target = $region44
        $region43: #{tpu_custom_call.1} parent=39 // pred_region
          %269 = dma.done %s261, 64
        $region44: #{tpu_custom_call.1} parent=39 // pred_fallthru
          _
        // Predicated region
        $region45: #{tpu_custom_call.1} parent=39 // pred_check
          %p270 = pneg %p77
        $region46: #{tpu_custom_call.1} parent=39 // pred_check_branch
          %272 = sbr.rel (%p270) target = $region48
        $region47: #{tpu_custom_call.1} parent=39 // pred_region
          %274 = dma.done [#allocation7], 256
        $region48: #{tpu_custom_call.1} parent=39 // pred_fallthru
          _
        %s275 = sand.u32 %s23, 1
        %s276 = scalar_lea.sflag [#allocation4], %s275
        %s277 = sand.u32 %s134, 1
        %s278 = smul.addr %s277, 8
        %s279 = scalar_lea.vmem [#allocation8], %s278
        // Predicated region
        $region49: #{tpu_custom_call.1} parent=39 // pred_check
          %p280 = pneg %p147
        $region50: #{tpu_custom_call.1} parent=39 // pred_check_branch
          %282 = sbr.rel (%p280) target = $region52
        $region51: #{tpu_custom_call.1} parent=39 // pred_region
          %284 = dma.done %s276, 128
        $region52: #{tpu_custom_call.1} parent=39 // pred_fallthru
          _
        %s285 = sand.u32 %s23, 1
        %s286 = scalar_lea.sflag [#allocation4], %s285
        %s287 = sand.u32 %s43, 1
        %s288 = smul.addr %s287, 4
        %s289 = scalar_lea.vmem [#allocation3], %s288
        %p290 = pneg %p56
        %p291 = pneg %p53
        %p292 = pneg %p77
        %p293 = pneg %p74
        %p294 = pneg %p98
        %p295 = pneg %p95
        %p296 = pneg %p119
        %p297 = pneg %p116
        %s298 = sand.u32 %s23, 1
        %s299 = scalar_lea.sflag [#allocation4], %s298
        %s300 = sand.u32 %s134, 1
        %s301 = smul.addr %s300, 8
        %s302 = scalar_lea.vmem [#allocation8], %s301
        %p303 = pneg %p147
        %p304 = pneg %p144
        %p305 = pneg %p175
        %p306 = pneg %p172
        %s307 = sand.u32 %s162, 1
        %s308 = scalar_lea.sflag [#allocation5], %s307
        %s309 = sand.u32 %s162, 1
        %s310 = smul.addr %s309, 8
        %s311 = scalar_lea.vmem [#allocation9], %s310
        %s312 = smul.u32 2, %s28
        %s313 = smul.u32 2, %s28
        %p314 = scmp.eq.s32.totalorder %s28, 0
        // Predicated region
        $region53: #{tpu_custom_call.1} parent=39 // pred_check
          %p315 = pneg %p314
        $region54: #{tpu_custom_call.1} parent=39 // pred_check_branch
          %317 = sbr.rel (%p315) target = $region56
        $region55: #{tpu_custom_call.1} parent=39 // pred_region
          %v318 = vld [vmem:[%s264] sm:$0xf]
          %v319 = vmul.f32 %v318, %v318
          %v321 = vperm.slane %v319, 0
          %v322 = vperm.slane %v319, 1
          %v323 = vperm.slane %v319, 2
          %v324 = vperm.slane %v319, 3
          %vm329 = vcmask 1040384
          %v330 = vsel %vm329, %v321, 0.0
          %v331 = vsel %vm329, %v322, 0.0
          %v332 = vadd.f32 %v330, %v331
          %v333 = vsel %vm329, %v323, 0.0
          %v334 = vadd.f32 %v332, %v333
          %v335 = vsel %vm329, %v324, 0.0
          %v336 = vadd.f32 %v334, %v335
          %337 = vadd.xlane.f32.xlu0 %v336
          %v338 = vpop.xlane.xlu0 %337
          %v339 = vadd.f32 %v338, 1e-12
          %v340 = vrsqrt.pop %v339
          %v341 = vmul.f32 %v340, %v339
          %v342 = vmul.f32 %v341, %v340
          %v343 = vmul.f32 0.5, %v342
          %v344 = vsub.f32 1.5, %v343
          %v345 = vmul.f32 %v340, %v344
          %vm346 = vweird.f32 %v339
          %vm347 = vweird.f32 %v340
          %vm348 = vmor %vm346, %vm347
          %v349 = vsel %vm348, %v340, %v345
          %v351 = vperm.slane %v349, 0
          %v353 = vmul.f32 %v318, %v351
          %v354 = vld [vmem:[#allocation6] sm:$0xff]
          %v355 = vld [vmem:[#allocation6 + $0x8] sm:$0xff]
          %v357 = vperm.slane %v353, 0
          %v358 = vperm.slane %v353, 1
          %v359 = vperm.slane %v353, 2
          %v360 = vperm.slane %v353, 3
          %v361 = vrot.slane %v358, 4
          %v362 = vrot.slane %v360, 4
          %vm363 = vcmask 1043456
          %v364 = vsel %vm363, %v357, %v361
          %v365 = vsel %vm363, %v359, %v362
          %v368 = vmul.f32 %v354, %v364
          %v369 = vmul.f32 %v355, %v365
          %372 = vst [vmem:[#allocation1] ss:$2 sm:$0xff] %v368
          %s373 = scalar_lea.vmem [#allocation1], 16
          %374 = vst [vmem:[%s373] ss:$2 sm:$0xff] %v369
          %v375 = vld.sshfl [vmem:[#allocation1] sm:$0xff pattern:$0x75316420]
          %v376 = vld.sshfl [vmem:[#allocation1 + $0x8] sm:$0xff pattern:$0x75316420]
          %v377 = vld.sshfl [vmem:[#allocation1 + $0x10] sm:$0xff pattern:$0x75316420]
          %v378 = vld.sshfl [vmem:[#allocation1 + $0x18] sm:$0xff pattern:$0x75316420]
          %v383 = vsel %vm363, %v375, 0.0
          %v384 = vsel %vm363, %v376, 0.0
          %v385 = vadd.f32 %v383, %v384
          %v386 = vsel %vm363, %v377, 0.0
          %v387 = vadd.f32 %v385, %v386
          %v388 = vsel %vm363, %v378, 0.0
          %v389 = vadd.f32 %v387, %v388
          %390 = vadd.xlane.f32.xlu0 %v389
          %v391 = vpop.xlane.xlu0 %390
          %v392 = vadd.f32 %v391, 1.0
          %v393 = vld [vmem:[%s2] sm:$0xf]
          %v394 = vadd.f32 %v392, %v393
          %v395 = vld [vmem:[%s3] sm:$0xf]
          %397 = vset.pattern.permute.xlu0 0
          %398 = vperm.xlu0 %397, %v394
          %v399 = vpop.permute.xlu0 %398
          %v401 = vmul.f32 %v399, %v395
          %vm402 = vcmask 27648
          %403 = vst.msk [vmem:[#allocation2] sm:$0xf] %vm402, %v401
        $region56: #{tpu_custom_call.1} parent=39 // pred_fallthru
          _
        %v404 = vld [vmem:[%s279] sm:$0xff]
        %v405 = vld [vmem:[#allocation2] sm:$0xf]
        %407 = vset.pattern.permute.xlu0 0
        %408 = vperm.xlu0 %407, %v405
        %v409 = vpop.permute.xlu0 %408
        %v412 = vperm.slane %v404, 0
        %v413 = vperm.slane %v404, 4
        %v416 = vperm.slane %v412, 0
        %v417 = vperm.slane %v413, 0
        %v418 = vmul.f32 %v409, %v416
        %v419 = vmul.f32 %v409, %v417
        %420 = vset.pattern.permute.xlu0 1
        %421 = vperm.xlu0 %420, %v405
        %v422 = vpop.permute.xlu0 %421
        %v424 = vperm.slane %v404, 1
        %v425 = vperm.slane %v404, 5
        %v428 = vperm.slane %v424, 1
        %v429 = vperm.slane %v425, 1
        %v430 = vmul.f32 %v422, %v428
        %v431 = vmul.f32 %v422, %v429
        %v432 = vadd.f32 %v418, %v430
        %v433 = vadd.f32 %v419, %v431
        %434 = vset.pattern.permute.xlu0 2
        %435 = vperm.xlu0 %434, %v405
        %v436 = vpop.permute.xlu0 %435
        %v438 = vperm.slane %v404, 2
        %v439 = vperm.slane %v404, 6
        %v442 = vperm.slane %v438, 2
        %v443 = vperm.slane %v439, 2
        %v444 = vmul.f32 %v436, %v442
        %v445 = vmul.f32 %v436, %v443
        %v446 = vadd.f32 %v432, %v444
        %v447 = vadd.f32 %v433, %v445
        %448 = vset.pattern.permute.xlu0 3
        %449 = vperm.xlu0 %448, %v405
        %v450 = vpop.permute.xlu0 %449
        %v452 = vperm.slane %v404, 3
        %v453 = vperm.slane %v404, 7
        %v456 = vperm.slane %v452, 3
        %v457 = vperm.slane %v453, 3
        %v458 = vmul.f32 %v450, %v456
        %v459 = vmul.f32 %v450, %v457
        %v460 = vadd.f32 %v446, %v458
        %v461 = vadd.f32 %v447, %v459
        %v464 = vrot.slane %v461, 4
        %vm465 = vcmask 1043456
        %v466 = vsel %vm465, %v460, %v464
        %468 = vst [vmem:[%s311] sm:$0xff] %v466
        %s469 = sand.u32 %s162, 1
        %s470 = scalar_lea.sflag [#allocation5], %s469
        %s471 = sand.u32 %s162, 1
        %s472 = smul.addr %s471, 8
        %s473 = scalar_lea.vmem [#allocation9], %s472
        // Predicated region
        $region57: #{tpu_custom_call.1} parent=39 // pred_check
          %p474 = pneg %p172
        $region58: #{tpu_custom_call.1} parent=39 // pred_check_branch
          %476 = sbr.rel (%p474) target = $region60
        $region59: #{tpu_custom_call.1} parent=39 // pred_region
          %s477 = smul.u32 2, %s28
          %479 = vsyncadd %s470, 0
          %s480 = smul.addr %s27, 2
          %s481 = sadd.s32 %s477, %s480
          %s482 = smul.addr %s481, 4
          %s483 = scalar_lea.hbm %s5, %s482
          %s485 = sshll.u32 %s473, 4
          %s486 = int_to_ptr.vmem [resolvable:$true] %s485
          %s487 = sshll.u32 %s483, 4
          %s488 = int_to_ptr.hbm [resolvable:$true] %s487
          %490 = dma.vmem_to_hbm [thread:$0]  %s486, 128, %s488, %s470
        $region60: #{tpu_custom_call.1} parent=39 // pred_fallthru
          _
      $region40: #{tpu_custom_call.1} parent=5 // pred_fallthru
        _
      %p491 = scmp.le.s32.totalorder 2, %s18
      // Predicated region
      $region61: #{tpu_custom_call.1} parent=5 // pred_check
        %p492 = pneg %p491
      $region62: #{tpu_custom_call.1} parent=5 // pred_check_branch
        %494 = sbr.rel (%p492) target = $region64
      $region63: #{tpu_custom_call.1} parent=5 // pred_region
        %s495 = ssub.s32 %s18, 2
        // Predicated region
        $region65: #{tpu_custom_call.1} parent=63 // pred_check
          %p496 = pneg %p178
        $region66: #{tpu_custom_call.1} parent=63 // pred_check_branch
          %498 = sbr.rel (%p496) target = $region68
        $region67: #{tpu_custom_call.1} parent=63 // pred_region
          %s499 = sand.u32 %s163, 1
          %s500 = scalar_lea.sflag [#allocation5], %s499
          %s501 = sand.u32 %s163, 1
          %s502 = smul.addr %s501, 8
          %s503 = scalar_lea.vmem [#allocation9], %s502
          %505 = dma.done %s500, 128
        $region68: #{tpu_custom_call.1} parent=63 // pred_fallthru
          _
      $region64: #{tpu_custom_call.1} parent=5 // pred_fallthru
        _
    $region6: #{tpu_custom_call.1} parent=1 // loop_footer
      %s22 = sadd.s32 1, %s18
    $region7: #{tpu_custom_call.1} parent=1 // loop_footer_branch
      %17 = sbr.rel target = $region3
    $region8: #{tpu_custom_call.1} parent=1 // loop_exit
      _
    %506 = vsyncpa [#allocation4], 1
    %s507 = scalar_lea.sflag [#allocation4], 1
    %508 = vsyncpa %s507, 1
    %509 = vsyncpa [#allocation7], 1
    %510 = vsyncpa [#allocation5], 1
    %s511 = scalar_lea.sflag [#allocation5], 1
    %512 = vsyncpa %s511, 1

</llo_original>
